<compile_context>
chip_gen: v5e
topology: v5e:2x2
jax: 0.10.0
libtpu: 0.0.40
codegen_flags: <defaults>
</compile_context>

<pallas_src>
import jax
import jax.numpy as jnp
from jax.experimental import pallas as pl
from jax.experimental.pallas import tpu as pltpu

NEG_SLOPE = 0.01  # nn.LeakyReLU default negative_slope


# ----------------------------------------------------------------------------
# Weight preprocessing (done once, outside the forward path)
# ----------------------------------------------------------------------------
def _build_bands(w, W):
    """w: (3, 3, Cin, Cout) HWIO -> (3, W*Cin, W*Cout) banded (Toeplitz-over-W)
    matrices.  bands[kh][q*Cin+ci, w0*Cout+co] = w[kh, q-w0+1, ci, co] inside the
    3-wide band, zero outside (this folds the W-axis zero padding into the weights).
    """
    KH, KW, Cin, Cout = w.shape
    eye = jnp.eye(W, dtype=w.dtype)
    bands = []
    for kh in range(KH):
        acc = jnp.zeros((W * Cin, W * Cout), w.dtype)
        for kw in range(KW):
            blk = jnp.kron(eye, w[kh, kw])            # block-diag (W*Cin, W*Cout)
            blk = jnp.pad(blk, ((Cin, Cin), (0, 0)))  # ((W+2)*Cin, W*Cout)
            a = (KW - 1 - kw) * Cin                   # shift by (kw-1) channel blocks
            acc = acc + blk[a:a + W * Cin, :]
        bands.append(acc)
    return jnp.stack(bands)                           # (3, W*Cin, W*Cout)


def prepare_params(params, width, compute_dtype=jnp.float32):
    """Build banded weights + W-tiled biases ONCE (pure weight preprocessing).

    compute_dtype: dtype of the matmul operands (bf16 recommended on v6e/v7x,
    f32 for exact checks / v5e-friendly elementwise).  Accumulation is always f32.
    """
    w1, b1, w2, b2 = params
    Cmid = w1.shape[-1]
    Cout = w2.shape[-1]
    band1 = _build_bands(w1, width).astype(compute_dtype)
    band2 = _build_bands(w2, width).astype(compute_dtype)
    b1t = jnp.tile(b1.astype(jnp.float32), width).reshape(1, width * Cmid)
    b2t = jnp.tile(b2.astype(jnp.float32), width).reshape(1, width * Cout)
    return band1, b1t, band2, b2t


def _pick_block_batch(B, H, target_rows=128, max_block=16):
    """Largest divisor of B (<= max_block) so that Bblk*(H+2) reaches ~target_rows."""
    want = max(1, -(-target_rows // (H + 2)))   # ceil
    want = min(want, max_block, B)
    for cand in range(want, 0, -1):
        if B % cand == 0:
            return cand
    return 1


# ----------------------------------------------------------------------------
# Fused kernel
# ----------------------------------------------------------------------------
def _make_double_conv_kernel(Bblk, H, neg_slope):
    M = Bblk * (H + 2)          # rows in the haloed scratch (per grid step)

    def kernel(x_ref, band1_ref, b1_ref, band2_ref, b2_ref, o_ref, p1_ref, p2_ref):
        """Fused (conv3x3 + LeakyReLU) x 2 for a block of Bblk images.

        x_ref    : (Bblk, H, W*Cin)      lane-dense input block
        band*_ref: (3, K, N)             banded conv weights (one per kh tap)
        b*_ref   : (1, N)                f32 bias tiled along W
        o_ref    : (Bblk, H, W*Cout)     output block (lane-dense last dim)
        p1_ref   : VMEM (M, W*Cin)       per-image H-haloed conv1 input
        p2_ref   : VMEM (M, W*Cmid)      per-image H-haloed conv2 input (VMEM-resident)
        """
        cdt = p1_ref.dtype

        # ---- stage 0: pack images into the haloed scratch; zero ONLY halo rows ----
        zin = jnp.zeros((1, p1_ref.shape[1]), cdt)
        for b in range(Bblk):                      # static, fully unrolled
            seg = b * (H + 2)
            p1_ref[seg:seg + 1, :] = zin                       # top halo
            p1_ref[seg + 1:seg + 1 + H, :] = x_ref[b].astype(cdt)
            p1_ref[seg + H + 1:seg + H + 2, :] = zin           # bottom halo

        # ---- conv1: 3 banded MXU matmuls over the whole slab (M-2 rows) ----------
        y1 = jnp.dot(p1_ref[0:M - 2, :], band1_ref[0], preferred_element_type=jnp.float32)
        y1 = y1 + jnp.dot(p1_ref[1:M - 1, :], band1_ref[1], preferred_element_type=jnp.float32)
        y1 = y1 + jnp.dot(p1_ref[2:M, :], band1_ref[2], preferred_element_type=jnp.float32)
        y1 = y1 + b1_ref[...]                                   # f32 bias
        y1 = jnp.where(y1 >= 0.0, y1, neg_slope * y1)           # f32 LeakyReLU

        # ---- intermediate stays in VMEM: slab store, then re-zero halo rows ------
        p2_ref[1:M - 1, :] = y1.astype(cdt)
        zmid = jnp.zeros((1, p2_ref.shape[1]), cdt)
        p2_ref[0:1, :] = zmid
        p2_ref[M - 1:M, :] = zmid
        if Bblk > 1:
            z2 = jnp.zeros((2, p2_ref.shape[1]), cdt)
            for b in range(1, Bblk):
                r = b * (H + 2)                  # rows r-1, r are halos of b-1 / b
                p2_ref[r - 1:r + 1, :] = z2

        # ---- conv2: 3 banded MXU matmuls + bias + LeakyReLU ----------------------
        y2 = jnp.dot(p2_ref[0:M - 2, :], band2_ref[0], preferred_element_type=jnp.float32)
        y2 = y2 + jnp.dot(p2_ref[1:M - 1, :], band2_ref[1], preferred_element_type=jnp.float32)
        y2 = y2 + jnp.dot(p2_ref[2:M, :], band2_ref[2], preferred_element_type=jnp.float32)
        y2 = y2 + b2_ref[...]
        y2 = jnp.where(y2 >= 0.0, y2, neg_slope * y2)
        y2 = y2.astype(o_ref.dtype)

        # ---- writeback: keep only the H valid rows of each image -----------------
        for b in range(Bblk):
            seg = b * (H + 2)
            o_ref[b] = y2[seg:seg + H, :]

    return kernel


# ----------------------------------------------------------------------------
# Wrappers
# ----------------------------------------------------------------------------
def double_conv_flat(x_flat, prepared, *, width, block_batch=None):
    """Lane-dense DoubleConv: (B, H, W*Cin) -> (B, H, W*Cout)."""
    band1, b1t, band2, b2t = prepared
    B, H, WCin = x_flat.shape
    W = width
    Cin = WCin // W
    Cmid = band1.shape[2] // W
    Cout = band2.shape[2] // W
    compute_dtype = band1.dtype

    Bblk = block_batch if block_batch is not None else _pick_block_batch(B, H)
    assert B % Bblk == 0, (B, Bblk)
    grid = (B // Bblk,)
    M = Bblk * (H + 2)

    kernel = _make_double_conv_kernel(Bblk, H, NEG_SLOPE)

    # Rough VMEM budget (double-buffered I/O + scratch), with headroom; explicit
    # limit matters on v7x (64 MiB physical / 32 MiB default scoped).
    cbytes = jnp.dtype(compute_dtype).itemsize
    ibytes = jnp.dtype(x_flat.dtype).itemsize
    est = (2 * (Bblk * H * WCin * ibytes
                + Bblk * H * W * Cout * ibytes
                + int(band1.size) * cbytes + int(band2.size) * cbytes
                + int(b1t.size) * 4 + int(b2t.size) * 4)
           + M * WCin * cbytes + M * W * Cmid * cbytes)
    vmem_limit_bytes = int(min(max(4 * est, 8 * 1024 * 1024), 64 * 1024 * 1024))

    out = pl.pallas_call(
        kernel,
        out_shape=jax.ShapeDtypeStruct((B, H, W * Cout), x_flat.dtype),
        grid_spec=pltpu.PrefetchScalarGridSpec(
            num_scalar_prefetch=0,
            grid=grid,
            in_specs=[
                pl.BlockSpec((Bblk, H, WCin), lambda g: (g, 0, 0)),
                pl.BlockSpec((3, W * Cin, W * Cmid), lambda g: (0, 0, 0)),
                pl.BlockSpec((1, W * Cmid), lambda g: (0, 0)),
                pl.BlockSpec((3, W * Cmid, W * Cout), lambda g: (0, 0, 0)),
                pl.BlockSpec((1, W * Cout), lambda g: (0, 0)),
            ],
            out_specs=pl.BlockSpec((Bblk, H, W * Cout), lambda g: (g, 0, 0)),
            scratch_shapes=[
                pltpu.VMEM((M, W * Cin), compute_dtype),
                pltpu.VMEM((M, W * Cmid), compute_dtype),
            ],
        ),
        compiler_params=pltpu.CompilerParams(
            dimension_semantics=("parallel",),
            vmem_limit_bytes=vmem_limit_bytes),
    )(x_flat, band1, b1t, band2, b2t)
    return out


def double_conv(x_nchw, prepared, *, block_batch=None):
    """PyTorch-API wrapper: (B, Cin, H, W) -> (B, Cout, H, W).

    The NCHW<->lane-dense transposes below are interface glue for the reference
    check; in a real network use `double_conv_flat` directly and keep the
    (B, H, W*C) layout between layers (saves two HBM round trips per call).
    """
    B, Cin, H, W = x_nchw.shape
    x_flat = jnp.transpose(x_nchw, (0, 2, 3, 1)).reshape(B, H, W * Cin)
    y = double_conv_flat(x_flat, prepared, width=W, block_batch=block_batch)
    Cout = y.shape[-1] // W
    return jnp.transpose(y.reshape(B, H, W, Cout), (0, 3, 1, 2))


# ----------------------------------------------------------------------------
# Params + reference
# ----------------------------------------------------------------------------
def init_params(key, in_channels, out_channels, dtype=jnp.float32):
    """Deterministic init; shapes match nn.Conv2d(3x3) weights in HWIO."""
    k1, k2, k3, k4 = jax.random.split(key, 4)

    def uinit(k, shape, fan_in):
        bound = 1.0 / jnp.sqrt(fan_in)
        return jax.random.uniform(k, shape, dtype, -bound, bound)

    fan1 = in_channels * 9
    fan2 = out_channels * 9
    w1 = uinit(k1, (3, 3, in_channels, out_channels), fan1)
    b1 = uinit(k2, (out_channels,), fan1)
    w2 = uinit(k3, (3, 3, out_channels, out_channels), fan2)
    b2 = uinit(k4, (out_channels,), fan2)
    return w1, b1, w2, b2


def _reference(x_nchw, params):
    """Pure-JAX reference (lax.conv) for correctness check."""
    w1, b1, w2, b2 = params

    def conv(x, w, b):
        y = jax.lax.conv_general_dilated(
            x, w, window_strides=(1, 1), padding=((1, 1), (1, 1)),
            dimension_numbers=("NCHW", "HWIO", "NCHW"))
        y = y + b[None, :, None, None]
        return jnp.where(y >= 0.0, y, NEG_SLOPE * y)

    return conv(conv(x_nchw, w1, b1), w2, b2)


if __name__ == "__main__":
    key = jax.random.PRNGKey(0)
    kx, kp, kx2 = jax.random.split(key, 3)

    B, Cin, H, W = 2, 4, 16, 16
    Cout = 8

    params = init_params(kp, Cin, Cout)
    fwd = jax.jit(double_conv)

    # ---- test 1: spec-sized problem, f32 matmul operands (tight check) ----
    x = jax.random.normal(kx, (B, Cin, H, W), jnp.float32)
    prepared_f32 = prepare_params(params, W, compute_dtype=jnp.float32)
    out = jax.block_until_ready(fwd(x, prepared_f32))
    ref = _reference(x, params)
    assert out.shape == (B, Cout, H, W)
    err = float(jnp.max(jnp.abs(out - ref)))
    assert jnp.allclose(out, ref, atol=1e-4, rtol=1e-4), err

    # ---- test 2: larger batch (MXU-filling Bblk) + bf16 matmul operands ----
    B2 = 16
    x2 = jax.random.normal(kx2, (B2, Cin, H, W), jnp.float32)
    prepared_bf16 = prepare_params(params, W, compute_dtype=jnp.bfloat16)
    out2 = jax.block_until_ready(fwd(x2, prepared_bf16))
    ref2 = _reference(x2, params)
    assert out2.shape == (B2, Cout, H, W)
    err2 = float(jnp.max(jnp.abs(out2 - ref2)))
    assert jnp.allclose(out2, ref2, atol=5e-2, rtol=5e-2), err2

    print("KERNEL_OK")
</pallas_src>

<mosaic_0001>
module attributes {stable_mosaic.version = 11 : i64} {
  func.func @kernel(%arg0: i32, %arg1: memref<2x16x64xf32, #tpu.memory_space<vmem>>, %arg2: memref<3x64x128xf32, #tpu.memory_space<vmem>>, %arg3: memref<1x128xf32, #tpu.memory_space<vmem>>, %arg4: memref<3x128x128xf32, #tpu.memory_space<vmem>>, %arg5: memref<1x128xf32, #tpu.memory_space<vmem>>, %arg6: memref<2x16x128xf32, #tpu.memory_space<vmem>>, %arg7: memref<36x64xf32, #tpu.memory_space<vmem>>, %arg8: memref<36x128xf32, #tpu.memory_space<vmem>>) attributes {dimension_semantics = [#tpu.dimension_semantics<parallel>], iteration_bounds = array<i64: 1>, scalar_prefetch = 0 : i64, scratch_operands = 2 : i64, tpu.core_type = #tpu.core_type<tc>, window_params = [{transform_indices = @transform_0, window_bounds = array<i64: 2, 16, 64>}, {pipeline_mode = #tpu.pipeline_mode<synchronous>, transform_indices = @transform_1, window_bounds = array<i64: 3, 64, 128>}, {pipeline_mode = #tpu.pipeline_mode<synchronous>, transform_indices = @transform_2, window_bounds = array<i64: 1, 128>}, {pipeline_mode = #tpu.pipeline_mode<synchronous>, transform_indices = @transform_3, window_bounds = array<i64: 3, 128, 128>}, {pipeline_mode = #tpu.pipeline_mode<synchronous>, transform_indices = @transform_4, window_bounds = array<i64: 1, 128>}, {transform_indices = @transform_5, window_bounds = array<i64: 2, 16, 128>}]} {
    %cst = arith.constant 0.000000e+00 : f32
    %0 = vector.broadcast %cst : f32 to vector<1x64xf32>
    %c0 = arith.constant 0 : index
    %c0_0 = arith.constant 0 : index
    %1 = vector.load %arg7[%c0, %c0_0] : memref<36x64xf32, #tpu.memory_space<vmem>>, vector<1x64xf32>
    tpu.vector_store %arg7[%c0, %c0_0], %0 {strides = array<i32>} : memref<36x64xf32, #tpu.memory_space<vmem>>, vector<1x64xf32>,
    %c0_1 = arith.constant 0 : index
    %c0_2 = arith.constant 0 : index
    %c0_3 = arith.constant 0 : index
    %2 = vector.load %arg1[%c0_1, %c0_2, %c0_3] : memref<2x16x64xf32, #tpu.memory_space<vmem>>, vector<1x16x64xf32>
    %3 = vector.shape_cast %2 : vector<1x16x64xf32> to vector<16x64xf32>
    %c1 = arith.constant 1 : index
    %c0_4 = arith.constant 0 : index
    %4 = vector.load %arg7[%c1, %c0_4] : memref<36x64xf32, #tpu.memory_space<vmem>>, vector<16x64xf32>
    tpu.vector_store %arg7[%c1, %c0_4], %3 {strides = array<i32>} : memref<36x64xf32, #tpu.memory_space<vmem>>, vector<16x64xf32>,
    %c17 = arith.constant 17 : index
    %c0_5 = arith.constant 0 : index
    %5 = vector.load %arg7[%c17, %c0_5] : memref<36x64xf32, #tpu.memory_space<vmem>>, vector<1x64xf32>
    tpu.vector_store %arg7[%c17, %c0_5], %0 {strides = array<i32>} : memref<36x64xf32, #tpu.memory_space<vmem>>, vector<1x64xf32>,
    %c18 = arith.constant 18 : index
    %c0_6 = arith.constant 0 : index
    %6 = vector.load %arg7[%c18, %c0_6] : memref<36x64xf32, #tpu.memory_space<vmem>>, vector<1x64xf32>
    tpu.vector_store %arg7[%c18, %c0_6], %0 {strides = array<i32>} : memref<36x64xf32, #tpu.memory_space<vmem>>, vector<1x64xf32>,
    %c1_7 = arith.constant 1 : index
    %c0_8 = arith.constant 0 : index
    %c0_9 = arith.constant 0 : index
    %7 = vector.load %arg1[%c1_7, %c0_8, %c0_9] : memref<2x16x64xf32, #tpu.memory_space<vmem>>, vector<1x16x64xf32>
    %8 = vector.shape_cast %7 : vector<1x16x64xf32> to vector<16x64xf32>
    %c19 = arith.constant 19 : index
    %c0_10 = arith.constant 0 : index
    %9 = vector.load %arg7[%c19, %c0_10] : memref<36x64xf32, #tpu.memory_space<vmem>>, vector<16x64xf32>
    tpu.vector_store %arg7[%c19, %c0_10], %8 {strides = array<i32>} : memref<36x64xf32, #tpu.memory_space<vmem>>, vector<16x64xf32>,
    %c35 = arith.constant 35 : index
    %c0_11 = arith.constant 0 : index
    %10 = vector.load %arg7[%c35, %c0_11] : memref<36x64xf32, #tpu.memory_space<vmem>>, vector<1x64xf32>
    tpu.vector_store %arg7[%c35, %c0_11], %0 {strides = array<i32>} : memref<36x64xf32, #tpu.memory_space<vmem>>, vector<1x64xf32>,
    %c0_12 = arith.constant 0 : index
    %c0_13 = arith.constant 0 : index
    %11 = vector.load %arg7[%c0_12, %c0_13] : memref<36x64xf32, #tpu.memory_space<vmem>>, vector<34x64xf32>
    %c0_14 = arith.constant 0 : index
    %c0_15 = arith.constant 0 : index
    %c0_16 = arith.constant 0 : index
    %12 = vector.load %arg2[%c0_14, %c0_15, %c0_16] : memref<3x64x128xf32, #tpu.memory_space<vmem>>, vector<1x64x128xf32>
    %13 = vector.shape_cast %12 : vector<1x64x128xf32> to vector<64x128xf32>
    %cst_17 = arith.constant dense<0.000000e+00> : vector<34x128xf32>
    %14 = tpu.matmul %11, %13, %cst_17 {dimension_numbers = #tpu.dot_dimension_numbers<[1], [0], [0], [1], [0, 0, 1, 1], [], []>} : vector<34x64xf32>, vector<64x128xf32>, vector<34x128xf32> -> vector<34x128xf32>
    %c1_18 = arith.constant 1 : index
    %c0_19 = arith.constant 0 : index
    %15 = vector.load %arg7[%c1_18, %c0_19] : memref<36x64xf32, #tpu.memory_space<vmem>>, vector<34x64xf32>
    %c1_20 = arith.constant 1 : index
    %c0_21 = arith.constant 0 : index
    %c0_22 = arith.constant 0 : index
    %16 = vector.load %arg2[%c1_20, %c0_21, %c0_22] : memref<3x64x128xf32, #tpu.memory_space<vmem>>, vector<1x64x128xf32>
    %17 = vector.shape_cast %16 : vector<1x64x128xf32> to vector<64x128xf32>
    %cst_23 = arith.constant dense<0.000000e+00> : vector<34x128xf32>
    %18 = tpu.matmul %15, %17, %cst_23 {dimension_numbers = #tpu.dot_dimension_numbers<[1], [0], [0], [1], [0, 0, 1, 1], [], []>} : vector<34x64xf32>, vector<64x128xf32>, vector<34x128xf32> -> vector<34x128xf32>
    %19 = arith.addf %14, %18 : vector<34x128xf32>
    %c2 = arith.constant 2 : index
    %c0_24 = arith.constant 0 : index
    %20 = vector.load %arg7[%c2, %c0_24] : memref<36x64xf32, #tpu.memory_space<vmem>>, vector<34x64xf32>
    %c2_25 = arith.constant 2 : index
    %c0_26 = arith.constant 0 : index
    %c0_27 = arith.constant 0 : index
    %21 = vector.load %arg2[%c2_25, %c0_26, %c0_27] : memref<3x64x128xf32, #tpu.memory_space<vmem>>, vector<1x64x128xf32>
    %22 = vector.shape_cast %21 : vector<1x64x128xf32> to vector<64x128xf32>
    %cst_28 = arith.constant dense<0.000000e+00> : vector<34x128xf32>
    %23 = tpu.matmul %20, %22, %cst_28 {dimension_numbers = #tpu.dot_dimension_numbers<[1], [0], [0], [1], [0, 0, 1, 1], [], []>} : vector<34x64xf32>, vector<64x128xf32>, vector<34x128xf32> -> vector<34x128xf32>
    %24 = arith.addf %19, %23 : vector<34x128xf32>
    %c0_29 = arith.constant 0 : index
    %c0_30 = arith.constant 0 : index
    %25 = vector.load %arg3[%c0_29, %c0_30] : memref<1x128xf32, #tpu.memory_space<vmem>>, vector<1x128xf32>
    %26 = vector.broadcast %25 : vector<1x128xf32> to vector<34x128xf32>
    %27 = arith.addf %24, %26 : vector<34x128xf32>
    %cst_31 = arith.constant 0.000000e+00 : f32
    %28 = vector.broadcast %cst_31 : f32 to vector<34x128xf32>
    %29 = arith.cmpf oge, %27, %28 : vector<34x128xf32>
    %cst_32 = arith.constant 0.00999999977 : f32
    %30 = vector.broadcast %cst_32 : f32 to vector<34x128xf32>
    %31 = arith.mulf %30, %27 : vector<34x128xf32>
    %32 = arith.select %29, %27, %31 : vector<34x128xi1>, vector<34x128xf32>
    %c1_33 = arith.constant 1 : index
    %c0_34 = arith.constant 0 : index
    %33 = vector.load %arg8[%c1_33, %c0_34] : memref<36x128xf32, #tpu.memory_space<vmem>>, vector<34x128xf32>
    tpu.vector_store %arg8[%c1_33, %c0_34], %32 {strides = array<i32>} : memref<36x128xf32, #tpu.memory_space<vmem>>, vector<34x128xf32>,
    %cst_35 = arith.constant 0.000000e+00 : f32
    %34 = vector.broadcast %cst_35 : f32 to vector<1x128xf32>
    %c0_36 = arith.constant 0 : index
    %c0_37 = arith.constant 0 : index
    %35 = vector.load %arg8[%c0_36, %c0_37] : memref<36x128xf32, #tpu.memory_space<vmem>>, vector<1x128xf32>
    tpu.vector_store %arg8[%c0_36, %c0_37], %34 {strides = array<i32>} : memref<36x128xf32, #tpu.memory_space<vmem>>, vector<1x128xf32>,
    %c35_38 = arith.constant 35 : index
    %c0_39 = arith.constant 0 : index
    %36 = vector.load %arg8[%c35_38, %c0_39] : memref<36x128xf32, #tpu.memory_space<vmem>>, vector<1x128xf32>
    tpu.vector_store %arg8[%c35_38, %c0_39], %34 {strides = array<i32>} : memref<36x128xf32, #tpu.memory_space<vmem>>, vector<1x128xf32>,
    %cst_40 = arith.constant 0.000000e+00 : f32
    %37 = vector.broadcast %cst_40 : f32 to vector<2x128xf32>
    %c17_41 = arith.constant 17 : index
    %c0_42 = arith.constant 0 : index
    %38 = vector.load %arg8[%c17_41, %c0_42] : memref<36x128xf32, #tpu.memory_space<vmem>>, vector<2x128xf32>
    tpu.vector_store %arg8[%c17_41, %c0_42], %37 {strides = array<i32>} : memref<36x128xf32, #tpu.memory_space<vmem>>, vector<2x128xf32>,
    %c0_43 = arith.constant 0 : index
    %c0_44 = arith.constant 0 : index
    %39 = vector.load %arg8[%c0_43, %c0_44] : memref<36x128xf32, #tpu.memory_space<vmem>>, vector<34x128xf32>
    %c0_45 = arith.constant 0 : index
    %c0_46 = arith.constant 0 : index
    %c0_47 = arith.constant 0 : index
    %40 = vector.load %arg4[%c0_45, %c0_46, %c0_47] : memref<3x128x128xf32, #tpu.memory_space<vmem>>, vector<1x128x128xf32>
    %41 = vector.shape_cast %40 : vector<1x128x128xf32> to vector<128x128xf32>
    %cst_48 = arith.constant dense<0.000000e+00> : vector<34x128xf32>
    %42 = tpu.matmul %39, %41, %cst_48 {dimension_numbers = #tpu.dot_dimension_numbers<[1], [0], [0], [1], [0, 0, 1, 1], [], []>} : vector<34x128xf32>, vector<128x128xf32>, vector<34x128xf32> -> vector<34x128xf32>
    %c1_49 = arith.constant 1 : index
    %c0_50 = arith.constant 0 : index
    %43 = vector.load %arg8[%c1_49, %c0_50] : memref<36x128xf32, #tpu.memory_space<vmem>>, vector<34x128xf32>
    %c1_51 = arith.constant 1 : index
    %c0_52 = arith.constant 0 : index
    %c0_53 = arith.constant 0 : index
    %44 = vector.load %arg4[%c1_51, %c0_52, %c0_53] : memref<3x128x128xf32, #tpu.memory_space<vmem>>, vector<1x128x128xf32>
    %45 = vector.shape_cast %44 : vector<1x128x128xf32> to vector<128x128xf32>
    %cst_54 = arith.constant dense<0.000000e+00> : vector<34x128xf32>
    %46 = tpu.matmul %43, %45, %cst_54 {dimension_numbers = #tpu.dot_dimension_numbers<[1], [0], [0], [1], [0, 0, 1, 1], [], []>} : vector<34x128xf32>, vector<128x128xf32>, vector<34x128xf32> -> vector<34x128xf32>
    %47 = arith.addf %42, %46 : vector<34x128xf32>
    %c2_55 = arith.constant 2 : index
    %c0_56 = arith.constant 0 : index
    %48 = vector.load %arg8[%c2_55, %c0_56] : memref<36x128xf32, #tpu.memory_space<vmem>>, vector<34x128xf32>
    %c2_57 = arith.constant 2 : index
    %c0_58 = arith.constant 0 : index
    %c0_59 = arith.constant 0 : index
    %49 = vector.load %arg4[%c2_57, %c0_58, %c0_59] : memref<3x128x128xf32, #tpu.memory_space<vmem>>, vector<1x128x128xf32>
    %50 = vector.shape_cast %49 : vector<1x128x128xf32> to vector<128x128xf32>
    %cst_60 = arith.constant dense<0.000000e+00> : vector<34x128xf32>
    %51 = tpu.matmul %48, %50, %cst_60 {dimension_numbers = #tpu.dot_dimension_numbers<[1], [0], [0], [1], [0, 0, 1, 1], [], []>} : vector<34x128xf32>, vector<128x128xf32>, vector<34x128xf32> -> vector<34x128xf32>
    %52 = arith.addf %47, %51 : vector<34x128xf32>
    %c0_61 = arith.constant 0 : index
    %c0_62 = arith.constant 0 : index
    %53 = vector.load %arg5[%c0_61, %c0_62] : memref<1x128xf32, #tpu.memory_space<vmem>>, vector<1x128xf32>
    %54 = vector.broadcast %53 : vector<1x128xf32> to vector<34x128xf32>
    %55 = arith.addf %52, %54 : vector<34x128xf32>
    %cst_63 = arith.constant 0.000000e+00 : f32
    %56 = vector.broadcast %cst_63 : f32 to vector<34x128xf32>
    %57 = arith.cmpf oge, %55, %56 : vector<34x128xf32>
    %cst_64 = arith.constant 0.00999999977 : f32
    %58 = vector.broadcast %cst_64 : f32 to vector<34x128xf32>
    %59 = arith.mulf %58, %55 : vector<34x128xf32>
    %60 = arith.select %57, %55, %59 : vector<34x128xi1>, vector<34x128xf32>
    %61 = vector.extract_strided_slice %60 {offsets = [0, 0], sizes = [16, 128], strides = [1, 1]} : vector<34x128xf32> to vector<16x128xf32>
    %c0_65 = arith.constant 0 : index
    %c0_66 = arith.constant 0 : index
    %c0_67 = arith.constant 0 : index
    %62 = vector.load %arg6[%c0_65, %c0_66, %c0_67] : memref<2x16x128xf32, #tpu.memory_space<vmem>>, vector<1x16x128xf32>
    %63 = vector.shape_cast %62 : vector<1x16x128xf32> to vector<16x128xf32>
    %64 = vector.shape_cast %61 : vector<16x128xf32> to vector<1x16x128xf32>
    tpu.vector_store %arg6[%c0_65, %c0_66, %c0_67], %64 {strides = array<i32>} : memref<2x16x128xf32, #tpu.memory_space<vmem>>, vector<1x16x128xf32>,
    %65 = vector.extract_strided_slice %60 {offsets = [18, 0], sizes = [16, 128], strides = [1, 1]} : vector<34x128xf32> to vector<16x128xf32>
    %c1_68 = arith.constant 1 : index
    %c0_69 = arith.constant 0 : index
    %c0_70 = arith.constant 0 : index
    %66 = vector.load %arg6[%c1_68, %c0_69, %c0_70] : memref<2x16x128xf32, #tpu.memory_space<vmem>>, vector<1x16x128xf32>
    %67 = vector.shape_cast %66 : vector<1x16x128xf32> to vector<16x128xf32>
    %68 = vector.shape_cast %65 : vector<16x128xf32> to vector<1x16x128xf32>
    tpu.vector_store %arg6[%c1_68, %c0_69, %c0_70], %68 {strides = array<i32>} : memref<2x16x128xf32, #tpu.memory_space<vmem>>, vector<1x16x128xf32>,
    return
  }
  func.func @transform_0(%arg0: i32) -> (i32, i32, i32) {
    %c0_i32 = arith.constant 0 : i32
    %c0_i32_0 = arith.constant 0 : i32
    %c0_i32_1 = arith.constant 0 : i32
    return %arg0, %c0_i32, %c0_i32_0 : i32, i32, i32
  }
  func.func @transform_1(%arg0: i32) -> (i32, i32, i32) {
    %c0_i32 = arith.constant 0 : i32
    %c0_i32_0 = arith.constant 0 : i32
    %c0_i32_1 = arith.constant 0 : i32
    %c0_i32_2 = arith.constant 0 : i32
    return %c0_i32, %c0_i32_0, %c0_i32_1 : i32, i32, i32
  }
  func.func @transform_2(%arg0: i32) -> (i32, i32) {
    %c0_i32 = arith.constant 0 : i32
    %c0_i32_0 = arith.constant 0 : i32
    %c0_i32_1 = arith.constant 0 : i32
    return %c0_i32, %c0_i32_0 : i32, i32
  }
  func.func @transform_3(%arg0: i32) -> (i32, i32, i32) {
    %c0_i32 = arith.constant 0 : i32
    %c0_i32_0 = arith.constant 0 : i32
    %c0_i32_1 = arith.constant 0 : i32
    %c0_i32_2 = arith.constant 0 : i32
    return %c0_i32, %c0_i32_0, %c0_i32_1 : i32, i32, i32
  }
  func.func @transform_4(%arg0: i32) -> (i32, i32) {
    %c0_i32 = arith.constant 0 : i32
    %c0_i32_0 = arith.constant 0 : i32
    %c0_i32_1 = arith.constant 0 : i32
    return %c0_i32, %c0_i32_0 : i32, i32
  }
  func.func @transform_5(%arg0: i32) -> (i32, i32, i32) {
    %c0_i32 = arith.constant 0 : i32
    %c0_i32_0 = arith.constant 0 : i32
    %c0_i32_1 = arith.constant 0 : i32
    return %arg0, %c0_i32, %c0_i32_0 : i32, i32, i32
  }
}

</mosaic_0001>

<llo_original>
// kernel: double_conv.1
$region0: #{double_conv.1}
  #allocation0 [shape = 'u32[]', space=smem, size = 0x4, offset = 0x4, fixed_abs, tag = 'smem constant byte address 0x4 - core index']
  #allocation1 [shape = 'u32[72,128]{1,0:T(1,128)}', space=vmem, size = 0x9000, scoped, tag = 'internal scratch']
  #allocation2 [shape = 'f32[36,64]{1,0:T(8,128)}', space=vmem, size = 0x5000, scoped, tag = 'scratch operand']
  #allocation3 [shape = 'f32[36,128]{1,0:T(8,128)}', space=vmem, size = 0x5000, scoped, tag = 'scratch operand']
  %s0 = inlined_call_operand.vmem [shape: f32[2,16,64], index: 0, kind: input, shape index: {}]
  %s1 = inlined_call_operand.hbm [shape: f32[3,64,128], index: 1, kind: input, shape index: {}]
  %s2 = inlined_call_operand.vmem [shape: f32[1,128], index: 2, kind: input, shape index: {}]
  %s3 = inlined_call_operand.vmem [shape: f32[3,128,128], index: 3, kind: input, shape index: {}]
  %s4 = inlined_call_operand.vmem [shape: f32[1,128], index: 4, kind: input, shape index: {}]
  %s5 = inlined_call_operand.vmem [shape: f32[2,16,128], index: 5, kind: output, shape index: {}]
  %s6 = sld [smem:[#allocation0]]
  $region34: #{double_conv.1} parent=0
    _
  %s8 = ssub.s32 1, %s6
  %s9 = scalar_select 0, %s8, %s6
  $region1: #{double_conv.1} parent=0
    #allocation4 [shape = 'u8[98304]{0}', space=vmem, size = 0x18000, scoped, tag = 'input window, operand 1, single buffered']
    #allocation5 [shape = 's32[1]{0}', space=sflag, size = 0x4, scoped, tag = 'scoped memory for double_conv.1']
    %10 = vsyncpa [#allocation5], 0
    // Predicated region
    $region2: #{double_conv.1} parent=1 // pred_check
      _
    $region3: #{double_conv.1} parent=1 // pred_check_branch
      %12 = sbr.rel (0) target = $region5
    $region4: #{double_conv.1} parent=1 // pred_region
      _
    $region5: #{double_conv.1} parent=1 // pred_fallthru
      _
    // Predicated region
    $region6: #{double_conv.1} parent=1 // pred_check
      _
    $region7: #{double_conv.1} parent=1 // pred_check_branch
      %14 = sbr.rel (0) target = $region9
    $region8: #{double_conv.1} parent=1 // pred_region
      %16 = vsyncadd [#allocation5], 0
      %s17 = sshll.u32 %s1, 4
      %s18 = int_to_ptr.hbm [resolvable:$true] %s17
      %s19 = sshll.u32 [#allocation4], 4
      %s20 = int_to_ptr.vmem [resolvable:$true] %s19
      %25 = dma.hbm_to_vmem [thread:$0]  %s18, 3072, %s20, [#allocation5], 128, 128, 8
    $region9: #{double_conv.1} parent=1 // pred_fallthru
      _
    // Predicated region
    $region10: #{double_conv.1} parent=1 // pred_check
      _
    $region11: #{double_conv.1} parent=1 // pred_check_branch
      %27 = sbr.rel (0) target = $region13
    $region12: #{double_conv.1} parent=1 // pred_region
      _
    $region13: #{double_conv.1} parent=1 // pred_fallthru
      _
    // Predicated region
    $region14: #{double_conv.1} parent=1 // pred_check
      _
    $region15: #{double_conv.1} parent=1 // pred_check_branch
      %29 = sbr.rel (0) target = $region17
    $region16: #{double_conv.1} parent=1 // pred_region
      _
    $region17: #{double_conv.1} parent=1 // pred_fallthru
      _
    // Predicated region
    $region18: #{double_conv.1} parent=1 // pred_check
      _
    $region19: #{double_conv.1} parent=1 // pred_check_branch
      %31 = sbr.rel (0) target = $region21
    $region20: #{double_conv.1} parent=1 // pred_region
      _
    $region21: #{double_conv.1} parent=1 // pred_fallthru
      _
    // Predicated region
    $region22: #{double_conv.1} parent=1 // pred_check
      _
    $region23: #{double_conv.1} parent=1 // pred_check_branch
      %33 = sbr.rel (0) target = $region25
    $region24: #{double_conv.1} parent=1 // pred_region
      %35 = dma.done [#allocation5], 3072
    $region25: #{double_conv.1} parent=1 // pred_fallthru
      _
    %vm36 = vcmask 516096
    %37 = vst.msk [vmem:[#allocation2] sm:$0x1] %vm36, 0.0
    %v38 = vld [vmem:[%s0] sm:$0xff]
    %v39 = vld [vmem:[%s0 + $0x8] sm:$0xff]
    %vm40 = vcmask 523264
    %41 = vst.msk [vmem:[#allocation2 + $0x1] sm:$0xff] %vm40, %v38
    %42 = vst.msk [vmem:[#allocation2 + $0x9] sm:$0xff] %vm40, %v39
    %43 = vst.msk [vmem:[#allocation2 + $0x11] sm:$0x1] %vm36, 0.0
    %44 = vst.msk [vmem:[#allocation2 + $0x12] sm:$0x1] %vm36, 0.0
    %s45 = scalar_lea.vmem %s0, 16
    %v46 = vld [vmem:[%s45] sm:$0xff]
    %v47 = vld [vmem:[%s45 + $0x8] sm:$0xff]
    %48 = vst.msk [vmem:[#allocation2 + $0x13] sm:$0xff] %vm40, %v46
    %49 = vst.msk [vmem:[#allocation2 + $0x1b] sm:$0xff] %vm40, %v47
    %50 = vst.msk [vmem:[#allocation2 + $0x23] sm:$0x1] %vm36, 0.0
    %v51 = vld [vmem:[#allocation2] sm:$0xff]
    %v52 = vld [vmem:[#allocation2 + $0x8] sm:$0xff]
    %v53 = vld [vmem:[#allocation2 + $0x10] sm:$0xff]
    %v54 = vld [vmem:[#allocation2 + $0x18] sm:$0xff]
    %v55 = vld [vmem:[#allocation2 + $0x20] sm:$0x3]
    %v56 = vld [vmem:[#allocation4] sm:$0xff]
    %v57 = vld [vmem:[#allocation4 + $0x8] sm:$0xff]
    %v58 = vld [vmem:[#allocation4 + $0x10] sm:$0xff]
    %v59 = vld [vmem:[#allocation4 + $0x18] sm:$0xff]
    %v60 = vld [vmem:[#allocation4 + $0x20] sm:$0xff]
    %v61 = vld [vmem:[#allocation4 + $0x28] sm:$0xff]
    %v62 = vld [vmem:[#allocation4 + $0x30] sm:$0xff]
    %v63 = vld [vmem:[#allocation4 + $0x38] sm:$0xff]
    %v64 = vld [vmem:[#allocation2 + $0x1] sm:$0xff]
    %v65 = vld [vmem:[#allocation2 + $0x9] sm:$0xff]
    %v66 = vld [vmem:[#allocation2 + $0x11] sm:$0xff]
    %v67 = vld [vmem:[#allocation2 + $0x19] sm:$0xff]
    %v68 = vld [vmem:[#allocation2 + $0x21] sm:$0x3]
    %s69 = scalar_lea.vmem [#allocation4], 64
    %v70 = vld [vmem:[%s69] sm:$0xff]
    %v71 = vld [vmem:[%s69 + $0x8] sm:$0xff]
    %v72 = vld [vmem:[%s69 + $0x10] sm:$0xff]
    %v73 = vld [vmem:[%s69 + $0x18] sm:$0xff]
    %v74 = vld [vmem:[%s69 + $0x20] sm:$0xff]
    %v75 = vld [vmem:[%s69 + $0x28] sm:$0xff]
    %v76 = vld [vmem:[%s69 + $0x30] sm:$0xff]
    %v77 = vld [vmem:[%s69 + $0x38] sm:$0xff]
    %v79 = vsel %vm40, %v64, 0
    %v82 = vsel %vm40, %v65, 0
    %v85 = vsel %vm40, %v66, 0
    %v88 = vsel %vm40, %v67, 0
    %v91 = vsel %vm40, %v68, 0
    %93 = vmatpush.msra.mxu0 0.0
    %94 = vmatpush.msra.mxu0 0.0
    %95 = vmatpush.msra.mxu0 0.0
    %96 = vmatpush.msra.mxu0 0.0
    %97 = vmatpush.msra.mxu0 0.0
    %98 = vmatpush.msra.mxu0 0.0
    %99 = vmatpush.msra.mxu0 0.0
    %100 = vmatpush.msra.mxu0 0.0
    %101 = vmatpush.msra.mxu0 %v77
    %102 = vmatpush.msra.mxu0 %v76
    %103 = vmatpush.msra.mxu0 %v75
    %104 = vmatpush.msra.mxu0 %v74
    %105 = vmatpush.msra.mxu0 %v73
    %106 = vmatpush.msra.mxu0 %v72
    %107 = vmatpush.msra.mxu0 %v71
    %108 = vmatpush.msra.mxu0 %v70
    %109 = vmatmul.f32.gmra.mxu0 %v79
    %v110 = vpop.f32.mrf.mxu0
    %v111 = vadd.f32 0.0, %v110
    %112 = vmatmul.f32.gmra.mxu0 %v82
    %v113 = vpop.f32.mrf.mxu0
    %v114 = vadd.f32 0.0, %v113
    %115 = vmatmul.f32.gmra.mxu0 %v85
    %v116 = vpop.f32.mrf.mxu0
    %v117 = vadd.f32 0.0, %v116
    %118 = vmatmul.f32.gmra.mxu0 %v88
    %v119 = vpop.f32.mrf.mxu0
    %v120 = vadd.f32 0.0, %v119
    %121 = vmatmul.f32.gmra.mxu0 %v91
    %v122 = vpop.f32.mrf.mxu0
    %v123 = vadd.f32 0.0, %v122
    %124 = vdwg.mxu0
    %v126 = vsel %vm40, %v51, 0
    %v129 = vsel %vm40, %v52, 0
    %v132 = vsel %vm40, %v53, 0
    %v135 = vsel %vm40, %v54, 0
    %v138 = vsel %vm40, %v55, 0
    %140 = vmatpush.msra.mxu0 0.0
    %141 = vmatpush.msra.mxu0 0.0
    %142 = vmatpush.msra.mxu0 0.0
    %143 = vmatpush.msra.mxu0 0.0
    %144 = vmatpush.msra.mxu0 0.0
    %145 = vmatpush.msra.mxu0 0.0
    %146 = vmatpush.msra.mxu0 0.0
    %147 = vmatpush.msra.mxu0 0.0
    %148 = vmatpush.msra.mxu0 %v63
    %149 = vmatpush.msra.mxu0 %v62
    %150 = vmatpush.msra.mxu0 %v61
    %151 = vmatpush.msra.mxu0 %v60
    %152 = vmatpush.msra.mxu0 %v59
    %153 = vmatpush.msra.mxu0 %v58
    %154 = vmatpush.msra.mxu0 %v57
    %155 = vmatpush.msra.mxu0 %v56
    %156 = vmatmul.f32.gmra.mxu0 %v126
    %v157 = vpop.f32.mrf.mxu0
    %v158 = vadd.f32 %v111, %v157
    %159 = vmatmul.f32.gmra.mxu0 %v129
    %v160 = vpop.f32.mrf.mxu0
    %v161 = vadd.f32 %v114, %v160
    %162 = vmatmul.f32.gmra.mxu0 %v132
    %v163 = vpop.f32.mrf.mxu0
    %v164 = vadd.f32 %v117, %v163
    %165 = vmatmul.f32.gmra.mxu0 %v135
    %v166 = vpop.f32.mrf.mxu0
    %v167 = vadd.f32 %v120, %v166
    %168 = vmatmul.f32.gmra.mxu0 %v138
    %v169 = vpop.f32.mrf.mxu0
    %v170 = vadd.f32 %v123, %v169
    %171 = vdwg.mxu0
    %v172 = vld [vmem:[#allocation2 + $0x2] sm:$0xff]
    %v173 = vld [vmem:[#allocation2 + $0xa] sm:$0xff]
    %v174 = vld [vmem:[#allocation2 + $0x12] sm:$0xff]
    %v175 = vld [vmem:[#allocation2 + $0x1a] sm:$0xff]
    %v176 = vld [vmem:[#allocation2 + $0x22] sm:$0x3]
    %s177 = scalar_lea.vmem [#allocation4], 128
    %v178 = vld [vmem:[%s177] sm:$0xff]
    %v179 = vld [vmem:[%s177 + $0x8] sm:$0xff]
    %v180 = vld [vmem:[%s177 + $0x10] sm:$0xff]
    %v181 = vld [vmem:[%s177 + $0x18] sm:$0xff]
    %v182 = vld [vmem:[%s177 + $0x20] sm:$0xff]
    %v183 = vld [vmem:[%s177 + $0x28] sm:$0xff]
    %v184 = vld [vmem:[%s177 + $0x30] sm:$0xff]
    %v185 = vld [vmem:[%s177 + $0x38] sm:$0xff]
    %v187 = vsel %vm40, %v172, 0
    %v190 = vsel %vm40, %v173, 0
    %v193 = vsel %vm40, %v174, 0
    %v196 = vsel %vm40, %v175, 0
    %v199 = vsel %vm40, %v176, 0
    %201 = vmatpush.msra.mxu0 0.0
    %202 = vmatpush.msra.mxu0 0.0
    %203 = vmatpush.msra.mxu0 0.0
    %204 = vmatpush.msra.mxu0 0.0
    %205 = vmatpush.msra.mxu0 0.0
    %206 = vmatpush.msra.mxu0 0.0
    %207 = vmatpush.msra.mxu0 0.0
    %208 = vmatpush.msra.mxu0 0.0
    %209 = vmatpush.msra.mxu0 %v185
    %210 = vmatpush.msra.mxu0 %v184
    %211 = vmatpush.msra.mxu0 %v183
    %212 = vmatpush.msra.mxu0 %v182
    %213 = vmatpush.msra.mxu0 %v181
    %214 = vmatpush.msra.mxu0 %v180
    %215 = vmatpush.msra.mxu0 %v179
    %216 = vmatpush.msra.mxu0 %v178
    %217 = vmatmul.f32.gmra.mxu0 %v187
    %v218 = vpop.f32.mrf.mxu0
    %v219 = vadd.f32 0.0, %v218
    %220 = vmatmul.f32.gmra.mxu0 %v190
    %v221 = vpop.f32.mrf.mxu0
    %v222 = vadd.f32 0.0, %v221
    %223 = vmatmul.f32.gmra.mxu0 %v193
    %v224 = vpop.f32.mrf.mxu0
    %v225 = vadd.f32 0.0, %v224
    %226 = vmatmul.f32.gmra.mxu0 %v196
    %v227 = vpop.f32.mrf.mxu0
    %v228 = vadd.f32 0.0, %v227
    %229 = vmatmul.f32.gmra.mxu0 %v199
    %v230 = vpop.f32.mrf.mxu0
    %v231 = vadd.f32 0.0, %v230
    %232 = vdwg.mxu0
    %v233 = vadd.f32 %v158, %v219
    %v234 = vadd.f32 %v161, %v222
    %v235 = vadd.f32 %v164, %v225
    %v236 = vadd.f32 %v167, %v228
    %v237 = vadd.f32 %v170, %v231
    %v238 = vld [vmem:[%s2] sm:$0x1]
    %v240 = vperm.slane %v238, 0
    %v242 = vadd.f32 %v233, %v240
    %v243 = vadd.f32 %v234, %v240
    %v244 = vadd.f32 %v235, %v240
    %v245 = vadd.f32 %v236, %v240
    %v246 = vadd.f32 %v237, %v240
    %vm247 = vcmp.ge.f32.partialorder %v242, 0.0
    %vm248 = vcmp.ge.f32.partialorder %v243, 0.0
    %vm249 = vcmp.ge.f32.partialorder %v244, 0.0
    %vm250 = vcmp.ge.f32.partialorder %v245, 0.0
    %vm251 = vcmp.ge.f32.partialorder %v246, 0.0
    %v252 = vmul.f32 %v242, 0.01
    %v253 = vmul.f32 %v243, 0.01
    %v254 = vmul.f32 %v244, 0.01
    %v255 = vmul.f32 %v245, 0.01
    %v256 = vmul.f32 %v246, 0.01
    %v257 = vsel %vm247, %v242, %v252
    %v258 = vsel %vm248, %v243, %v253
    %v259 = vsel %vm249, %v244, %v254
    %v260 = vsel %vm250, %v245, %v255
    %v261 = vsel %vm251, %v246, %v256
    %262 = vst [vmem:[#allocation3 + $0x1] sm:$0xff] %v257
    %263 = vst [vmem:[#allocation3 + $0x9] sm:$0xff] %v258
    %264 = vst [vmem:[#allocation3 + $0x11] sm:$0xff] %v259
    %265 = vst [vmem:[#allocation3 + $0x19] sm:$0xff] %v260
    %266 = vst [vmem:[#allocation3 + $0x21] sm:$0x3] %v261
    %267 = vst [vmem:[#allocation3] sm:$0x1] 0.0
    %268 = vst [vmem:[#allocation3 + $0x23] sm:$0x1] 0.0
    %269 = vst [vmem:[#allocation3 + $0x11] sm:$0x3] 0.0
    %v270 = vld [vmem:[#allocation3] sm:$0xff]
    %v271 = vld [vmem:[#allocation3 + $0x8] sm:$0xff]
    %v272 = vld [vmem:[#allocation3 + $0x10] sm:$0xff]
    %v273 = vld [vmem:[#allocation3 + $0x18] sm:$0xff]
    %v274 = vld [vmem:[#allocation3 + $0x20] sm:$0x3]
    %v275 = vld [vmem:[%s3] sm:$0xff]
    %v276 = vld [vmem:[%s3 + $0x8] sm:$0xff]
    %v277 = vld [vmem:[%s3 + $0x10] sm:$0xff]
    %v278 = vld [vmem:[%s3 + $0x18] sm:$0xff]
    %v279 = vld [vmem:[%s3 + $0x20] sm:$0xff]
    %v280 = vld [vmem:[%s3 + $0x28] sm:$0xff]
    %v281 = vld [vmem:[%s3 + $0x30] sm:$0xff]
    %v282 = vld [vmem:[%s3 + $0x38] sm:$0xff]
    %v283 = vld [vmem:[%s3 + $0x40] sm:$0xff]
    %v284 = vld [vmem:[%s3 + $0x48] sm:$0xff]
    %v285 = vld [vmem:[%s3 + $0x50] sm:$0xff]
    %v286 = vld [vmem:[%s3 + $0x58] sm:$0xff]
    %v287 = vld [vmem:[%s3 + $0x60] sm:$0xff]
    %v288 = vld [vmem:[%s3 + $0x68] sm:$0xff]
    %v289 = vld [vmem:[%s3 + $0x70] sm:$0xff]
    %v290 = vld [vmem:[%s3 + $0x78] sm:$0xff]
    %v291 = vld [vmem:[#allocation3 + $0x1] sm:$0xff]
    %v292 = vld [vmem:[#allocation3 + $0x9] sm:$0xff]
    %v293 = vld [vmem:[#allocation3 + $0x11] sm:$0xff]
    %v294 = vld [vmem:[#allocation3 + $0x19] sm:$0xff]
    %v295 = vld [vmem:[#allocation3 + $0x21] sm:$0x3]
    %s296 = scalar_lea.vmem %s3, 128
    %v297 = vld [vmem:[%s296] sm:$0xff]
    %v298 = vld [vmem:[%s296 + $0x8] sm:$0xff]
    %v299 = vld [vmem:[%s296 + $0x10] sm:$0xff]
    %v300 = vld [vmem:[%s296 + $0x18] sm:$0xff]
    %v301 = vld [vmem:[%s296 + $0x20] sm:$0xff]
    %v302 = vld [vmem:[%s296 + $0x28] sm:$0xff]
    %v303 = vld [vmem:[%s296 + $0x30] sm:$0xff]
    %v304 = vld [vmem:[%s296 + $0x38] sm:$0xff]
    %v305 = vld [vmem:[%s296 + $0x40] sm:$0xff]
    %v306 = vld [vmem:[%s296 + $0x48] sm:$0xff]
    %v307 = vld [vmem:[%s296 + $0x50] sm:$0xff]
    %v308 = vld [vmem:[%s296 + $0x58] sm:$0xff]
    %v309 = vld [vmem:[%s296 + $0x60] sm:$0xff]
    %v310 = vld [vmem:[%s296 + $0x68] sm:$0xff]
    %v311 = vld [vmem:[%s296 + $0x70] sm:$0xff]
    %v312 = vld [vmem:[%s296 + $0x78] sm:$0xff]
    %313 = vmatpush.msra.mxu0 %v312
    %314 = vmatpush.msra.mxu0 %v311
    %315 = vmatpush.msra.mxu0 %v310
    %316 = vmatpush.msra.mxu0 %v309
    %317 = vmatpush.msra.mxu0 %v308
    %318 = vmatpush.msra.mxu0 %v307
    %319 = vmatpush.msra.mxu0 %v306
    %320 = vmatpush.msra.mxu0 %v305
    %321 = vmatpush.msra.mxu0 %v304
    %322 = vmatpush.msra.mxu0 %v303
    %323 = vmatpush.msra.mxu0 %v302
    %324 = vmatpush.msra.mxu0 %v301
    %325 = vmatpush.msra.mxu0 %v300
    %326 = vmatpush.msra.mxu0 %v299
    %327 = vmatpush.msra.mxu0 %v298
    %328 = vmatpush.msra.mxu0 %v297
    %329 = vmatmul.f32.gmra.mxu0 %v291
    %v330 = vpop.f32.mrf.mxu0
    %v331 = vadd.f32 0.0, %v330
    %332 = vmatmul.f32.gmra.mxu0 %v292
    %v333 = vpop.f32.mrf.mxu0
    %v334 = vadd.f32 0.0, %v333
    %335 = vmatmul.f32.gmra.mxu0 %v293
    %v336 = vpop.f32.mrf.mxu0
    %v337 = vadd.f32 0.0, %v336
    %338 = vmatmul.f32.gmra.mxu0 %v294
    %v339 = vpop.f32.mrf.mxu0
    %v340 = vadd.f32 0.0, %v339
    %341 = vmatmul.f32.gmra.mxu0 %v295
    %v342 = vpop.f32.mrf.mxu0
    %v343 = vadd.f32 0.0, %v342
    %344 = vdwg.mxu0
    %345 = vmatpush.msra.mxu0 %v290
    %346 = vmatpush.msra.mxu0 %v289
    %347 = vmatpush.msra.mxu0 %v288
    %348 = vmatpush.msra.mxu0 %v287
    %349 = vmatpush.msra.mxu0 %v286
    %350 = vmatpush.msra.mxu0 %v285
    %351 = vmatpush.msra.mxu0 %v284
    %352 = vmatpush.msra.mxu0 %v283
    %353 = vmatpush.msra.mxu0 %v282
    %354 = vmatpush.msra.mxu0 %v281
    %355 = vmatpush.msra.mxu0 %v280
    %356 = vmatpush.msra.mxu0 %v279
    %357 = vmatpush.msra.mxu0 %v278
    %358 = vmatpush.msra.mxu0 %v277
    %359 = vmatpush.msra.mxu0 %v276
    %360 = vmatpush.msra.mxu0 %v275
    %361 = vmatmul.f32.gmra.mxu0 %v270
    %v362 = vpop.f32.mrf.mxu0
    %v363 = vadd.f32 %v331, %v362
    %364 = vmatmul.f32.gmra.mxu0 %v271
    %v365 = vpop.f32.mrf.mxu0
    %v366 = vadd.f32 %v334, %v365
    %367 = vmatmul.f32.gmra.mxu0 %v272
    %v368 = vpop.f32.mrf.mxu0
    %v369 = vadd.f32 %v337, %v368
    %370 = vmatmul.f32.gmra.mxu0 %v273
    %v371 = vpop.f32.mrf.mxu0
    %v372 = vadd.f32 %v340, %v371
    %373 = vmatmul.f32.gmra.mxu0 %v274
    %v374 = vpop.f32.mrf.mxu0
    %v375 = vadd.f32 %v343, %v374
    %376 = vdwg.mxu0
    %v377 = vld [vmem:[#allocation3 + $0x2] sm:$0xff]
    %v378 = vld [vmem:[#allocation3 + $0xa] sm:$0xff]
    %v379 = vld [vmem:[#allocation3 + $0x12] sm:$0xff]
    %v380 = vld [vmem:[#allocation3 + $0x1a] sm:$0xff]
    %v381 = vld [vmem:[#allocation3 + $0x22] sm:$0x3]
    %s382 = scalar_lea.vmem %s3, 256
    %v383 = vld [vmem:[%s382] sm:$0xff]
    %v384 = vld [vmem:[%s382 + $0x8] sm:$0xff]
    %v385 = vld [vmem:[%s382 + $0x10] sm:$0xff]
    %v386 = vld [vmem:[%s382 + $0x18] sm:$0xff]
    %v387 = vld [vmem:[%s382 + $0x20] sm:$0xff]
    %v388 = vld [vmem:[%s382 + $0x28] sm:$0xff]
    %v389 = vld [vmem:[%s382 + $0x30] sm:$0xff]
    %v390 = vld [vmem:[%s382 + $0x38] sm:$0xff]
    %v391 = vld [vmem:[%s382 + $0x40] sm:$0xff]
    %v392 = vld [vmem:[%s382 + $0x48] sm:$0xff]
    %v393 = vld [vmem:[%s382 + $0x50] sm:$0xff]
    %v394 = vld [vmem:[%s382 + $0x58] sm:$0xff]
    %v395 = vld [vmem:[%s382 + $0x60] sm:$0xff]
    %v396 = vld [vmem:[%s382 + $0x68] sm:$0xff]
    %v397 = vld [vmem:[%s382 + $0x70] sm:$0xff]
    %v398 = vld [vmem:[%s382 + $0x78] sm:$0xff]
    %399 = vmatpush.msra.mxu0 %v398
    %400 = vmatpush.msra.mxu0 %v397
    %401 = vmatpush.msra.mxu0 %v396
    %402 = vmatpush.msra.mxu0 %v395
    %403 = vmatpush.msra.mxu0 %v394
    %404 = vmatpush.msra.mxu0 %v393
    %405 = vmatpush.msra.mxu0 %v392
    %406 = vmatpush.msra.mxu0 %v391
    %407 = vmatpush.msra.mxu0 %v390
    %408 = vmatpush.msra.mxu0 %v389
    %409 = vmatpush.msra.mxu0 %v388
    %410 = vmatpush.msra.mxu0 %v387
    %411 = vmatpush.msra.mxu0 %v386
    %412 = vmatpush.msra.mxu0 %v385
    %413 = vmatpush.msra.mxu0 %v384
    %414 = vmatpush.msra.mxu0 %v383
    %415 = vmatmul.f32.gmra.mxu0 %v377
    %v416 = vpop.f32.mrf.mxu0
    %v417 = vadd.f32 0.0, %v416
    %418 = vmatmul.f32.gmra.mxu0 %v378
    %v419 = vpop.f32.mrf.mxu0
    %v420 = vadd.f32 0.0, %v419
    %421 = vmatmul.f32.gmra.mxu0 %v379
    %v422 = vpop.f32.mrf.mxu0
    %v423 = vadd.f32 0.0, %v422
    %424 = vmatmul.f32.gmra.mxu0 %v380
    %v425 = vpop.f32.mrf.mxu0
    %v426 = vadd.f32 0.0, %v425
    %427 = vmatmul.f32.gmra.mxu0 %v381
    %v428 = vpop.f32.mrf.mxu0
    %v429 = vadd.f32 0.0, %v428
    %430 = vdwg.mxu0
    %v431 = vadd.f32 %v363, %v417
    %v432 = vadd.f32 %v366, %v420
    %v433 = vadd.f32 %v369, %v423
    %v434 = vadd.f32 %v372, %v426
    %v435 = vadd.f32 %v375, %v429
    %v436 = vld [vmem:[%s4] sm:$0x1]
    %v438 = vperm.slane %v436, 0
    %v440 = vadd.f32 %v431, %v438
    %v441 = vadd.f32 %v432, %v438
    %v442 = vadd.f32 %v433, %v438
    %v443 = vadd.f32 %v434, %v438
    %v444 = vadd.f32 %v435, %v438
    %vm445 = vcmp.ge.f32.partialorder %v440, 0.0
    %vm446 = vcmp.ge.f32.partialorder %v441, 0.0
    %vm447 = vcmp.ge.f32.partialorder %v442, 0.0
    %vm448 = vcmp.ge.f32.partialorder %v443, 0.0
    %vm449 = vcmp.ge.f32.partialorder %v444, 0.0
    %v450 = vmul.f32 %v440, 0.01
    %v451 = vmul.f32 %v441, 0.01
    %v452 = vmul.f32 %v442, 0.01
    %v453 = vmul.f32 %v443, 0.01
    %v454 = vmul.f32 %v444, 0.01
    %v455 = vsel %vm445, %v440, %v450
    %v456 = vsel %vm446, %v441, %v451
    %v457 = vsel %vm447, %v442, %v452
    %v458 = vsel %vm448, %v443, %v453
    %v459 = vsel %vm449, %v444, %v454
    %460 = vst [vmem:[%s5] sm:$0xff] %v455
    %461 = vst [vmem:[%s5 + $0x8] sm:$0xff] %v456
    %s462 = scalar_lea.vmem %s5, 16
    %463 = vst [vmem:[%s462 - $0x2] sm:$0xfc] %v457
    %464 = vst [vmem:[%s462 + $0x6] sm:$0xff] %v458
    %465 = vst [vmem:[%s462 + $0xe] sm:$0x3] %v459
    // Predicated region
    $region26: #{double_conv.1} parent=1 // pred_check
      _
    $region27: #{double_conv.1} parent=1 // pred_check_branch
      %467 = sbr.rel (0) target = $region29
    $region28: #{double_conv.1} parent=1 // pred_region
      _
    $region29: #{double_conv.1} parent=1 // pred_fallthru
      _
    // Predicated region
    $region30: #{double_conv.1} parent=1 // pred_check
      _
    $region31: #{double_conv.1} parent=1 // pred_check_branch
      %469 = sbr.rel (0) target = $region33
    $region32: #{double_conv.1} parent=1 // pred_region
      _
    $region33: #{double_conv.1} parent=1 // pred_fallthru
      _
    %470 = vsyncpa [#allocation5], 1

</llo_original>
